<compile_context>
chip_gen: v7x
topology: tpu7x:2x2x1
jax: 0.10.0
libtpu: 0.0.40
codegen_flags: <defaults>
</compile_context>

<pallas_src>
import jax
import jax.numpy as jnp
from jax import lax
from jax.experimental import pallas as pl
from jax.experimental.pallas import tpu as pltpu


def _round_up(x, m):
    return ((x + m - 1) // m) * m


def _dot_nt(x, w):
    # x: (tm, tk), w: (tn, tk) -> (tm, tn); contract the shared K dimension.
    # W is consumed in its native nn.Linear (N, K) layout by the MXU, so no
    # transpose is ever materialized in-kernel (no XLU pressure).
    return lax.dot_general(
        x, w,
        dimension_numbers=(((1,), (1,)), ((), ())),
        preferred_element_type=jnp.float32)


# ------------------------------- kernels ------------------------------------


def _adafm_fc_kernel_fused(x_ref, xsum_ref, w_ref, gbb_ref, o_ref):
    """Whole reduction resident: one (tm, tn) output tile per grid step."""
    acc = _dot_nt(x_ref[...], w_ref[...])               # (tm, tn) f32
    gamma = gbb_ref[0:1, :]                             # (1, tn) f32
    beta = gbb_ref[1:2, :]
    bias = gbb_ref[2:3, :]
    o_ref[...] = (acc * gamma + xsum_ref[...] * beta + bias).astype(o_ref.dtype)


def _adafm_fc_kernel_ktiled_f32(x_ref, xsum_ref, w_ref, gbb_ref, o_ref):
    """K tiled; f32 output is resident across k, accumulate into it directly."""
    k = pl.program_id(2)

    @pl.when(k == 0)
    def _():
        o_ref[...] = jnp.zeros_like(o_ref)

    o_ref[...] += _dot_nt(x_ref[...], w_ref[...])

    @pl.when(k == pl.num_programs(2) - 1)
    def _():
        gamma = gbb_ref[0:1, :]
        beta = gbb_ref[1:2, :]
        bias = gbb_ref[2:3, :]
        o_ref[...] = o_ref[...] * gamma + xsum_ref[...] * beta + bias


def _adafm_fc_kernel_ktiled_acc(x_ref, xsum_ref, w_ref, gbb_ref, o_ref, acc_ref):
    """K tiled; non-f32 output -> accumulate in an f32 VMEM scratch."""
    k = pl.program_id(2)

    @pl.when(k == 0)
    def _():
        acc_ref[...] = jnp.zeros_like(acc_ref)

    acc_ref[...] += _dot_nt(x_ref[...], w_ref[...])

    @pl.when(k == pl.num_programs(2) - 1)
    def _():
        gamma = gbb_ref[0:1, :]
        beta = gbb_ref[1:2, :]
        bias = gbb_ref[2:3, :]
        o_ref[...] = (acc_ref[...] * gamma + xsum_ref[...] * beta
                      + bias).astype(o_ref.dtype)


# ------------------------------- wrapper -------------------------------------

_VMEM_BUDGET = 40 * 1024 * 1024      # double-buffer estimate budget (all gens)
_VMEM_LIMIT_CAP = 48 * 1024 * 1024   # stays inside v7x's 64 MiB physical VMEM


def _vmem_limit_bytes(estimate):
    # Generous but bounded: at least 32 MiB (above v5e's 16 MiB scoped default),
    # ~1.5x the double-buffer estimate + margin, never above the v7x-safe cap.
    return int(min(max(int(estimate * 1.5) + (2 << 20), 32 << 20), _VMEM_LIMIT_CAP))


def adafm_fc(x, W, gamma, beta, b, self_b, *, tm=None, tn=None, tk=None,
             force_acc_scratch=False):
    """JAX/Pallas equivalent of AdaFM_fc.forward(input, W, b, task_id=-1).

    x: (M, K) input; W: (N, K) nn.Linear weight; gamma/beta: (1, N) or (N,);
    b, self_b: (N,). Returns the (M, N) output in x.dtype.
    """
    M, K = x.shape
    N, K2 = W.shape
    assert K == K2, "input / weight K mismatch"

    itemsize = jnp.dtype(x.dtype).itemsize
    out_dtype = x.dtype
    out_itemsize = itemsize
    tn_given = tn is not None

    # --- tile selection ------------------------------------------------------
    # Sublane pack of the streamed dtype (f32 -> 8, bf16 -> 16, int8/fp8 -> 32).
    pack = max(8, 32 // itemsize)
    if tm is None:
        if M >= 256:
            tm = 256
        elif M >= 128:
            tm = 128
        else:
            tm = _round_up(M, pack)
    Mp = _round_up(M, tm)

    if tn is None:
        if N % 128 == 0:
            # Pick a divisor of N so W is never padded (copied) along N.
            tn = next((c for c in (1024, 512, 256, 128) if N % c == 0), 128)
        else:
            tn = min(512, _round_up(N, 128))
    Np = _round_up(N, tn)

    # Megacore: make sure a "parallel" grid axis has extent >= 2 when possible
    # (v7x has 2 TensorCores; a 1x1 grid leaves one idle).
    if (not tn_given and Mp // tm == 1 and Np // tn == 1
            and Np >= 256 and (Np // 2) % 128 == 0):
        tn = Np // 2

    # --- fused (whole-K resident) vs K-tiled path -----------------------------
    Kp_full = _round_up(K, 128)
    fused_est = 2 * (tm * Kp_full * itemsize        # x strip (double-buffered)
                     + tn * Kp_full * itemsize      # W strip
                     + tm * 4                       # rowsum(x)
                     + 8 * tn * 4                   # gamma/beta/bias slab
                     + tm * tn * out_itemsize)      # output tile
    use_fused = (tk is None) and (Kp_full <= 4096) and (fused_est <= _VMEM_BUDGET)

    if use_fused:
        tk = Kp_full
    elif tk is None:
        tk = min(2048, _round_up(K, 128))
        if K % 128 == 0:
            # Prefer a divisor of K so x / W are never padded along K.
            for cand in (2048, 1536, 1024, 768, 512, 384, 256, 128):
                if cand <= K and K % cand == 0:
                    tk = cand
                    break
    Kp = _round_up(K, tk)

    # --- operand preparation (pad only when strictly necessary) ---------------
    xp = x if (Mp == M and Kp == K) else jnp.pad(x, ((0, Mp - M), (0, Kp - K)))
    Wp = W if (Np == N and Kp == K) else jnp.pad(W, ((0, Np - N), (0, Kp - K)))

    # rowsum(x) hoisted out of the kernel, computed once in f32.
    xsum = jnp.sum(x, axis=1, keepdims=True, dtype=jnp.float32)       # (M, 1)
    if Mp != M:
        xsum = jnp.pad(xsum, ((0, Mp - M), (0, 0)))

    # gamma / beta / (b + self.b) stacked into one f32 (8, Np) slab:
    # row 0 = gamma, row 1 = beta, row 2 = fused bias, rows 3..7 = zero pad.
    gamma2 = jnp.reshape(gamma, (1, N)).astype(jnp.float32)
    beta2 = jnp.reshape(beta, (1, N)).astype(jnp.float32)
    bias2 = (jnp.reshape(b, (1, N)).astype(jnp.float32)
             + jnp.reshape(self_b, (1, N)).astype(jnp.float32))
    gbb = jnp.concatenate([gamma2, beta2, bias2], axis=0)             # (3, N)
    gbb = jnp.pad(gbb, ((0, 5), (0, Np - N)))                         # (8, Np)

    gm, gn, gk = Mp // tm, Np // tn, Kp // tk

    if gk == 1:
        # No reduction grid axis: no accumulator, no init/finalize phases.
        est = 2 * (tm * Kp * itemsize + tn * Kp * itemsize + tm * 4
                   + 8 * tn * 4 + tm * tn * out_itemsize)
        out = pl.pallas_call(
            _adafm_fc_kernel_fused,
            out_shape=jax.ShapeDtypeStruct((Mp, Np), out_dtype),
            grid_spec=pltpu.PrefetchScalarGridSpec(
                num_scalar_prefetch=0,
                grid=(gm, gn),
                in_specs=[
                    pl.BlockSpec((tm, Kp), lambda i, j: (i, 0)),    # x
                    pl.BlockSpec((tm, 1), lambda i, j: (i, 0)),     # rowsum(x)
                    pl.BlockSpec((tn, Kp), lambda i, j: (j, 0)),    # W (N, K)
                    pl.BlockSpec((8, tn), lambda i, j: (0, j)),     # gamma/beta/bias
                ],
                out_specs=pl.BlockSpec((tm, tn), lambda i, j: (i, j)),
            ),
            compiler_params=pltpu.CompilerParams(
                dimension_semantics=("parallel", "parallel"),
                vmem_limit_bytes=_vmem_limit_bytes(est)),
        )(xp, xsum, Wp, gbb)
    else:
        # Large K: accumulate over the innermost ("arbitrary") grid axis.
        use_direct = (jnp.dtype(out_dtype) == jnp.dtype(jnp.float32)
                      and not force_acc_scratch)
        kernel = (_adafm_fc_kernel_ktiled_f32 if use_direct
                  else _adafm_fc_kernel_ktiled_acc)
        scratch_shapes = [] if use_direct else [pltpu.VMEM((tm, tn), jnp.float32)]
        est = 2 * (tm * tk * itemsize + tn * tk * itemsize + tm * 4
                   + 8 * tn * 4 + tm * tn * out_itemsize)
        if not use_direct:
            est += tm * tn * 4
        # TODO(synk): optionally add pipeline_mode=pl.Buffered(3) on the W spec
        # when the VMEM estimate leaves headroom (few-% DMA-jitter win).
        out = pl.pallas_call(
            kernel,
            out_shape=jax.ShapeDtypeStruct((Mp, Np), out_dtype),
            grid_spec=pltpu.PrefetchScalarGridSpec(
                num_scalar_prefetch=0,
                grid=(gm, gn, gk),
                in_specs=[
                    pl.BlockSpec((tm, tk), lambda i, j, k: (i, k)),   # x
                    pl.BlockSpec((tm, 1), lambda i, j, k: (i, 0)),    # rowsum(x)
                    pl.BlockSpec((tn, tk), lambda i, j, k: (j, k)),   # W (N, K)
                    pl.BlockSpec((8, tn), lambda i, j, k: (0, j)),    # gamma/beta/bias
                ],
                out_specs=pl.BlockSpec((tm, tn), lambda i, j, k: (i, j)),
                scratch_shapes=scratch_shapes,
            ),
            compiler_params=pltpu.CompilerParams(
                dimension_semantics=("parallel", "parallel", "arbitrary"),
                vmem_limit_bytes=_vmem_limit_bytes(est)),
        )(xp, xsum, Wp, gbb)

    return out[:M, :N]


if __name__ == "__main__":
    # Small shapes consistent with AdaFM_fc's fc layer: batch=8, z_dim(K)=256,
    # in_channel(N)=256.
    M, K, N = 8, 256, 256

    key = jax.random.PRNGKey(0)
    kx, kw, kg, kbe, kb, ksb = jax.random.split(key, 6)

    x = jax.random.normal(kx, (M, K), dtype=jnp.float32)          # input
    W = jax.random.normal(kw, (N, K), dtype=jnp.float32) * 0.05   # Linear weight

    # Module __init__ uses gamma=ones, beta=zeros, b=zeros; perturb them so the
    # AdaFM modulation is actually exercised.
    gamma = jnp.ones((1, N), jnp.float32) + 0.1 * jax.random.normal(
        kg, (1, N), dtype=jnp.float32)
    beta = 0.1 * jax.random.normal(kbe, (1, N), dtype=jnp.float32)
    b = 0.1 * jax.random.normal(kb, (N,), dtype=jnp.float32)        # fc bias arg
    self_b = 0.1 * jax.random.normal(ksb, (N,), dtype=jnp.float32)  # self.b

    # Pure-JAX reference of the PyTorch forward (task_id == -1 branch).
    W0 = W.T * gamma + beta
    ref = x @ W0 + b + self_b

    # 1) Default path: whole-K fused kernel (no reduction grid axis).
    out = jax.block_until_ready(adafm_fc(x, W, gamma, beta, b, self_b))
    assert out.shape == (M, N)
    assert jnp.allclose(out, ref, atol=1e-3, rtol=1e-3), "fused path mismatch"

    # 2) K-tiled path: direct f32 accumulation into the resident output block.
    out2 = jax.block_until_ready(adafm_fc(x, W, gamma, beta, b, self_b, tk=128))
    assert jnp.allclose(out2, ref, atol=1e-3, rtol=1e-3), "k-tiled f32 path mismatch"

    # 3) K-tiled path with the f32 VMEM accumulator scratch (non-f32 output path).
    out3 = jax.block_until_ready(
        adafm_fc(x, W, gamma, beta, b, self_b, tk=128, force_acc_scratch=True))
    assert jnp.allclose(out3, ref, atol=1e-3, rtol=1e-3), "k-tiled acc path mismatch"

    print("KERNEL_OK")
</pallas_src>

<mosaic_0001>
module attributes {stable_mosaic.version = 11 : i64} {
  func.func @_adafm_fc_kernel_fused(%arg0: i32, %arg1: i32, %arg2: memref<8x256xf32, #tpu.memory_space<vmem>>, %arg3: memref<8x1xf32, #tpu.memory_space<vmem>>, %arg4: memref<128x256xf32, #tpu.memory_space<vmem>>, %arg5: memref<8x128xf32, #tpu.memory_space<vmem>>, %arg6: memref<8x128xf32, #tpu.memory_space<vmem>>) attributes {dimension_semantics = [#tpu.dimension_semantics<parallel>, #tpu.dimension_semantics<parallel>], iteration_bounds = array<i64: 1, 2>, scalar_prefetch = 0 : i64, scratch_operands = 0 : i64, tpu.core_type = #tpu.core_type<tc>, window_params = [{transform_indices = @transform_0, window_bounds = array<i64: 8, 256>}, {transform_indices = @transform_1, window_bounds = array<i64: 8, 1>}, {transform_indices = @transform_2, window_bounds = array<i64: 128, 256>}, {transform_indices = @transform_3, window_bounds = array<i64: 8, 128>}, {transform_indices = @transform_4, window_bounds = array<i64: 8, 128>}]} {
    %c0 = arith.constant 0 : index
    %c0_0 = arith.constant 0 : index
    %0 = vector.load %arg2[%c0, %c0_0] : memref<8x256xf32, #tpu.memory_space<vmem>>, vector<8x256xf32>
    %c0_1 = arith.constant 0 : index
    %c0_2 = arith.constant 0 : index
    %1 = vector.load %arg4[%c0_1, %c0_2] : memref<128x256xf32, #tpu.memory_space<vmem>>, vector<128x256xf32>
    %cst = arith.constant dense<0.000000e+00> : vector<8x128xf32>
    %2 = tpu.matmul %0, %1, %cst {dimension_numbers = #tpu.dot_dimension_numbers<[1], [1], [0], [0], [0, 0, 1, 0], [], []>} : vector<8x256xf32>, vector<128x256xf32>, vector<8x128xf32> -> vector<8x128xf32>
    %c0_3 = arith.constant 0 : index
    %c0_4 = arith.constant 0 : index
    %3 = vector.load %arg5[%c0_3, %c0_4] : memref<8x128xf32, #tpu.memory_space<vmem>>, vector<1x128xf32>
    %c1 = arith.constant 1 : index
    %c0_5 = arith.constant 0 : index
    %4 = vector.load %arg5[%c1, %c0_5] : memref<8x128xf32, #tpu.memory_space<vmem>>, vector<1x128xf32>
    %c2 = arith.constant 2 : index
    %c0_6 = arith.constant 0 : index
    %5 = vector.load %arg5[%c2, %c0_6] : memref<8x128xf32, #tpu.memory_space<vmem>>, vector<1x128xf32>
    %6 = vector.broadcast %3 : vector<1x128xf32> to vector<8x128xf32>
    %7 = arith.mulf %2, %6 : vector<8x128xf32>
    %c0_7 = arith.constant 0 : index
    %c0_8 = arith.constant 0 : index
    %8 = vector.load %arg3[%c0_7, %c0_8] : memref<8x1xf32, #tpu.memory_space<vmem>>, vector<8x1xf32>
    %9 = vector.broadcast %8 : vector<8x1xf32> to vector<8x128xf32>
    %10 = vector.broadcast %4 : vector<1x128xf32> to vector<8x128xf32>
    %11 = arith.mulf %9, %10 : vector<8x128xf32>
    %12 = arith.addf %7, %11 : vector<8x128xf32>
    %13 = vector.broadcast %5 : vector<1x128xf32> to vector<8x128xf32>
    %14 = arith.addf %12, %13 : vector<8x128xf32>
    %c0_9 = arith.constant 0 : index
    %c0_10 = arith.constant 0 : index
    %15 = vector.load %arg6[%c0_9, %c0_10] : memref<8x128xf32, #tpu.memory_space<vmem>>, vector<8x128xf32>
    tpu.vector_store %arg6[%c0_9, %c0_10], %14 {strides = array<i32>} : memref<8x128xf32, #tpu.memory_space<vmem>>, vector<8x128xf32>,
    return
  }
  func.func @transform_0(%arg0: i32, %arg1: i32) -> (i32, i32) {
    %c0_i32 = arith.constant 0 : i32
    %c0_i32_0 = arith.constant 0 : i32
    return %arg0, %c0_i32 : i32, i32
  }
  func.func @transform_1(%arg0: i32, %arg1: i32) -> (i32, i32) {
    %c0_i32 = arith.constant 0 : i32
    %c0_i32_0 = arith.constant 0 : i32
    return %arg0, %c0_i32 : i32, i32
  }
  func.func @transform_2(%arg0: i32, %arg1: i32) -> (i32, i32) {
    %c0_i32 = arith.constant 0 : i32
    %c0_i32_0 = arith.constant 0 : i32
    return %arg1, %c0_i32 : i32, i32
  }
  func.func @transform_3(%arg0: i32, %arg1: i32) -> (i32, i32) {
    %c0_i32 = arith.constant 0 : i32
    %c0_i32_0 = arith.constant 0 : i32
    return %c0_i32, %arg1 : i32, i32
  }
  func.func @transform_4(%arg0: i32, %arg1: i32) -> (i32, i32) {
    %c0_i32 = arith.constant 0 : i32
    return %arg0, %arg1 : i32, i32
  }
}

</mosaic_0001>

<llo_original>
// kernel: tpu_custom_call.1
$region0: #{tpu_custom_call.1}
  #allocation0 [shape = 'u32[]', space=smem, size = 0x4, offset = 0x4, fixed_abs, tag = 'smem constant byte address 0x4 - core index']
  #allocation1 [shape = 'u32[144,128]{1,0:T(1,128)}', space=vmem, size = 0x12000, scoped, tag = 'internal scratch']
  %s0 = inlined_call_operand.hbm [shape: f32[8,256], index: 0, kind: input, shape index: {}]
  %s1 = inlined_call_operand.vmem [shape: f32[8,1], index: 1, kind: input, shape index: {}]
  %s2 = inlined_call_operand.hbm [shape: f32[256,256], index: 2, kind: input, shape index: {}]
  %s3 = inlined_call_operand.vmem [shape: f32[8,256], index: 3, kind: input, shape index: {}]
  %s4 = inlined_call_operand.hbm [shape: f32[8,256], index: 4, kind: output, shape index: {}]
  %s5 = sld [smem:[#allocation0]]
  $region57: #{tpu_custom_call.1} parent=0
    _
  %s7 = ssub.s32 1, %s5
  %s8 = scalar_select 0, %s7, %s5
  $region1: #{tpu_custom_call.1} parent=0
    #allocation2 [shape = 'u8[8192]{0}', space=vmem, size = 0x2000, scoped, tag = 'input window, operand 0, single buffered']
    #allocation3 [shape = 's32[2]{0}', space=sflag, size = 0x8, scoped, tag = 'scoped memory for tpu_custom_call.1']
    #allocation4 [shape = 's32[2]{0}', space=sflag, size = 0x8, scoped, tag = 'scoped memory for tpu_custom_call.1']
    #allocation5 [shape = 'u8[262144]{0}', space=vmem, size = 0x40000, scoped, tag = 'input window, operand 2']
    #allocation6 [shape = 's32[2]{0}', space=sflag, size = 0x8, scoped, tag = 'scoped memory for tpu_custom_call.1']
    #allocation7 [shape = 'u8[8192]{0}', space=vmem, size = 0x2000, scoped, tag = 'output window, operand 0']
    %9 = vsyncpa [#allocation3], 0
    %10 = vsyncpa [#allocation6], 0
    %s11 = scalar_lea.sflag [#allocation6], 1
    %12 = vsyncpa %s11, 0
    %13 = vsyncpa [#allocation4], 0
    %s14 = scalar_lea.sflag [#allocation4], 1
    %15 = vsyncpa %s14, 0
    loop: start=0, step=1, limit=4
    $region2: #{tpu_custom_call.1} parent=1 // loop_pre_header
      _
    $region3: #{tpu_custom_call.1} parent=1 // loop_header
      %s17 = sphi 0, %s21
      %p18 = scmp.ge.s32.totalorder %s17, 4
      %s24 = sphi 0, %s36
      %s25 = sphi 0, %s32
      %s26 = sphi 0, %s24
      %s27 = sphi 0, %s25
      %s28 = sphi 0, %s26
      %s29 = sphi 0, %s27
      %s39 = sphi 0, %s41
      %s42 = sphi 0, %s39
      %s43 = sphi 0, %s42
      %s59 = sphi 0, %s43
      %s65 = sphi 0, %s67
      %s68 = sphi 0, %s65
      %s69 = sphi 0, %s68
      %s85 = sphi 0, %s69
      %s91 = sphi 0, %s93
      %s94 = sphi 0, %s91
      %s95 = sphi 0, %s94
      %s111 = sphi 0, %s95
      %s117 = sphi 0, %s119
      %s120 = sphi 0, %s117
      %s121 = sphi 0, %s120
      %s137 = sphi 0, %s121
      %s145 = sphi 0, %s147
      %s148 = sphi 0, %s145
      %s149 = sphi 0, %s148
      %s165 = sphi 0, %s149
    $region4: #{tpu_custom_call.1} parent=1 // loop_header_branch
      %20 = sbr.rel (%p18) target = $region8
    $region5: #{tpu_custom_call.1} parent=1 // loop_body
      %s22 = ssub.s32 %s17, 1
      %s23 = ssub.s32 %s17, 2
      %s30 = sadd.s32 1, %s25
      %p31 = scmp.ge.s32.totalorder %s30, 2
      %s32 = scalar_select %p31, 0, %s30
      %s33 = sadd.s32 1, %s24
      %s34 = scalar_select %p31, %s33, %s24
      %p35 = scmp.ge.s32.totalorder %s34, 1
      %s36 = scalar_select %p35, 0, %s34
      %s37 = ssub.s32 %s24, %s36
      %p38 = scmp.eq.s32.totalorder %s37, 0
      %s40 = sadd.s32 %s39, 1
      %s41 = scalar_select %p38, %s39, %s40
      %p44 = pneg %p38
      %p45 = scmp.eq.s32.totalorder %s17, 1
      %p46 = por %p44, %p45
      %p47 = scmp.ne.s32.totalorder %s39, %s42
      %p48 = scmp.eq.s32.totalorder %s17, 0
      %p49 = por %p47, %p48
      %p50 = scmp.ne.s32.totalorder %s39, %s42
      %p51 = scmp.eq.s32.totalorder %s22, 1
      %p52 = por %p50, %p51
      %p53 = scmp.ne.s32.totalorder %s42, %s43
      %p54 = scmp.eq.s32.totalorder %s22, 0
      %p55 = por %p53, %p54
      %p56 = scmp.ne.s32.totalorder %s42, %s43
      %p57 = scmp.eq.s32.totalorder %s23, 1
      %p58 = por %p56, %p57
      %p60 = scmp.ne.s32.totalorder %s43, %s59
      %p61 = scmp.eq.s32.totalorder %s23, 0
      %p62 = por %p60, %p61
      %s63 = ssub.s32 %s24, %s36
      %p64 = scmp.eq.s32.totalorder %s63, 0
      %s66 = sadd.s32 %s65, 1
      %s67 = scalar_select %p64, %s65, %s66
      %p70 = pneg %p64
      %p71 = scmp.eq.s32.totalorder %s17, 1
      %p72 = por %p70, %p71
      %p73 = scmp.ne.s32.totalorder %s65, %s68
      %p74 = scmp.eq.s32.totalorder %s17, 0
      %p75 = por %p73, %p74
      %p76 = scmp.ne.s32.totalorder %s65, %s68
      %p77 = scmp.eq.s32.totalorder %s22, 1
      %p78 = por %p76, %p77
      %p79 = scmp.ne.s32.totalorder %s68, %s69
      %p80 = scmp.eq.s32.totalorder %s22, 0
      %p81 = por %p79, %p80
      %p82 = scmp.ne.s32.totalorder %s68, %s69
      %p83 = scmp.eq.s32.totalorder %s23, 1
      %p84 = por %p82, %p83
      %p86 = scmp.ne.s32.totalorder %s69, %s85
      %p87 = scmp.eq.s32.totalorder %s23, 0
      %p88 = por %p86, %p87
      %s89 = ssub.s32 %s25, %s32
      %p90 = scmp.eq.s32.totalorder %s89, 0
      %s92 = sadd.s32 %s91, 1
      %s93 = scalar_select %p90, %s91, %s92
      %p96 = pneg %p90
      %p97 = scmp.eq.s32.totalorder %s17, 1
      %p98 = por %p96, %p97
      %p99 = scmp.ne.s32.totalorder %s91, %s94
      %p100 = scmp.eq.s32.totalorder %s17, 0
      %p101 = por %p99, %p100
      %p102 = scmp.ne.s32.totalorder %s91, %s94
      %p103 = scmp.eq.s32.totalorder %s22, 1
      %p104 = por %p102, %p103
      %p105 = scmp.ne.s32.totalorder %s94, %s95
      %p106 = scmp.eq.s32.totalorder %s22, 0
      %p107 = por %p105, %p106
      %p108 = scmp.ne.s32.totalorder %s94, %s95
      %p109 = scmp.eq.s32.totalorder %s23, 1
      %p110 = por %p108, %p109
      %p112 = scmp.ne.s32.totalorder %s95, %s111
      %p113 = scmp.eq.s32.totalorder %s23, 0
      %p114 = por %p112, %p113
      %s115 = ssub.s32 %s25, %s32
      %p116 = scmp.eq.s32.totalorder %s115, 0
      %s118 = sadd.s32 %s117, 1
      %s119 = scalar_select %p116, %s117, %s118
      %p122 = pneg %p116
      %p123 = scmp.eq.s32.totalorder %s17, 1
      %p124 = por %p122, %p123
      %p125 = scmp.ne.s32.totalorder %s117, %s120
      %p126 = scmp.eq.s32.totalorder %s17, 0
      %p127 = por %p125, %p126
      %p128 = scmp.ne.s32.totalorder %s117, %s120
      %p129 = scmp.eq.s32.totalorder %s22, 1
      %p130 = por %p128, %p129
      %p131 = scmp.ne.s32.totalorder %s120, %s121
      %p132 = scmp.eq.s32.totalorder %s22, 0
      %p133 = por %p131, %p132
      %p134 = scmp.ne.s32.totalorder %s120, %s121
      %p135 = scmp.eq.s32.totalorder %s23, 1
      %p136 = por %p134, %p135
      %p138 = scmp.ne.s32.totalorder %s121, %s137
      %p139 = scmp.eq.s32.totalorder %s23, 0
      %p140 = por %p138, %p139
      %s141 = ssub.s32 %s24, %s36
      %s142 = ssub.s32 %s25, %s32
      %s143 = sor.u32 %s141, %s142
      %p144 = scmp.eq.s32.totalorder %s143, 0
      %s146 = sadd.s32 %s145, 1
      %s147 = scalar_select %p144, %s145, %s146
      %p150 = pneg %p144
      %p151 = scmp.eq.s32.totalorder %s17, 1
      %p152 = por %p150, %p151
      %p153 = scmp.ne.s32.totalorder %s145, %s148
      %p154 = scmp.eq.s32.totalorder %s17, 0
      %p155 = por %p153, %p154
      %p156 = scmp.ne.s32.totalorder %s145, %s148
      %p157 = scmp.eq.s32.totalorder %s22, 1
      %p158 = por %p156, %p157
      %p159 = scmp.ne.s32.totalorder %s148, %s149
      %p160 = scmp.eq.s32.totalorder %s22, 0
      %p161 = por %p159, %p160
      %p162 = scmp.ne.s32.totalorder %s148, %s149
      %p163 = scmp.eq.s32.totalorder %s23, 1
      %p164 = por %p162, %p163
      %p166 = scmp.ne.s32.totalorder %s149, %s165
      %p167 = scmp.eq.s32.totalorder %s23, 0
      %p168 = por %p166, %p167
      %p169 = scmp.le.s32.totalorder 1, %s17
      %p170 = scmp.lt.s32.totalorder %s17, 3
      %p171 = pnand %p169, %p170
      %p172 = pneg %p171
      // Predicated region
      $region9: #{tpu_custom_call.1} parent=5 // pred_check
        _
      $region10: #{tpu_custom_call.1} parent=5 // pred_check_branch
        %174 = sbr.rel (%p171) target = $region12
      $region11: #{tpu_custom_call.1} parent=5 // pred_region
        %s175 = ssub.s32 %s17, 1
        // Predicated region
        $region13: #{tpu_custom_call.1} parent=11 // pred_check
          %p176 = pneg %p55
        $region14: #{tpu_custom_call.1} parent=11 // pred_check_branch
          %178 = sbr.rel (%p176) target = $region16
        $region15: #{tpu_custom_call.1} parent=11 // pred_region
          %s180 = ssub.s32 256, 256
          %181 = vsyncadd [#allocation3], %s180
          %s182 = smul.addr %s26, 2
          %s183 = smul.addr %s182, 128
          %s184 = scalar_lea.hbm %s0, %s183
          %s186 = sshll.u32 [#allocation2], 4
          %s187 = int_to_ptr.vmem [resolvable:$true] %s186
          %189 = dma.hbm_to_vmem [thread:$0]  %s184, 256, %s187, [#allocation3]
        $region16: #{tpu_custom_call.1} parent=11 // pred_fallthru
          _
        // Predicated region
        $region17: #{tpu_custom_call.1} parent=11 // pred_check
          %p190 = pneg %p81
        $region18: #{tpu_custom_call.1} parent=11 // pred_check_branch
          %192 = sbr.rel (%p190) target = $region20
        $region19: #{tpu_custom_call.1} parent=11 // pred_region
          %p193 = scmp.lt.s32.totalorder %s26, 0
          %s194 = scalar_select %p193, %s26, 0
          %s195 = smul.addr %s194, 8
          %s196 = scalar_lea.vmem %s1, %s195
        $region20: #{tpu_custom_call.1} parent=11 // pred_fallthru
          _
      $region12: #{tpu_custom_call.1} parent=5 // pred_fallthru
        _
      %p197 = scmp.lt.s32.totalorder %s17, 2
      // Predicated region
      $region21: #{tpu_custom_call.1} parent=5 // pred_check
        %p198 = pneg %p197
      $region22: #{tpu_custom_call.1} parent=5 // pred_check_branch
        %200 = sbr.rel (%p198) target = $region24
      $region23: #{tpu_custom_call.1} parent=5 // pred_region
        // Predicated region
        $region25: #{tpu_custom_call.1} parent=23 // pred_check
          %p201 = pneg %p101
        $region26: #{tpu_custom_call.1} parent=23 // pred_check_branch
          %203 = sbr.rel (%p201) target = $region28
        $region27: #{tpu_custom_call.1} parent=23 // pred_region
          %s204 = sand.u32 %s91, 1
          %s205 = scalar_lea.sflag [#allocation6], %s204
          %s206 = sand.u32 %s91, 1
          %s207 = smul.addr %s206, 256
          %s208 = scalar_lea.vmem [#allocation5], %s207
          %s209 = smul.u32 16, %s25
          %s211 = ssub.s32 4096, 4096
          %212 = vsyncadd %s205, %s211
          %s213 = smul.addr %s209, 2
          %s214 = smul.addr %s213, 128
          %s215 = scalar_lea.hbm %s2, %s214
          %s216 = sshll.u32 %s208, 4
          %s217 = int_to_ptr.vmem [resolvable:$true] %s216
          %222 = dma.hbm_to_vmem [thread:$0]  %s215, 4096, %s217, %s205, 256, 256, 16
        $region28: #{tpu_custom_call.1} parent=23 // pred_fallthru
          _
        // Predicated region
        $region29: #{tpu_custom_call.1} parent=23 // pred_check
          %p223 = pneg %p127
        $region30: #{tpu_custom_call.1} parent=23 // pred_check_branch
          %225 = sbr.rel (%p223) target = $region32
        $region31: #{tpu_custom_call.1} parent=23 // pred_region
          %p226 = scmp.lt.s32.totalorder %s25, 1
          %s227 = scalar_select %p226, %s25, 1
          %s228 = smul.addr %s227, 8
          %s229 = scalar_lea.vmem %s3, %s228
        $region32: #{tpu_custom_call.1} parent=23 // pred_fallthru
          _
      $region24: #{tpu_custom_call.1} parent=5 // pred_fallthru
        _
      %p230 = scmp.le.s32.totalorder 1, %s17
      %p231 = scmp.lt.s32.totalorder %s17, 3
      %p232 = pnand %p230, %p231
      %p233 = pneg %p232
      // Predicated region
      $region33: #{tpu_custom_call.1} parent=5 // pred_check
        _
      $region34: #{tpu_custom_call.1} parent=5 // pred_check_branch
        %235 = sbr.rel (%p232) target = $region36
      $region35: #{tpu_custom_call.1} parent=5 // pred_region
        %s236 = ssub.s32 %s17, 1
        // Predicated region
        $region37: #{tpu_custom_call.1} parent=35 // pred_check
          %p237 = pneg %p55
        $region38: #{tpu_custom_call.1} parent=35 // pred_check_branch
          %239 = sbr.rel (%p237) target = $region40
        $region39: #{tpu_custom_call.1} parent=35 // pred_region
          %240 = dma.done [#allocation3], 256
        $region40: #{tpu_custom_call.1} parent=35 // pred_fallthru
          _
        %s241 = sand.u32 %s94, 1
        %s242 = scalar_lea.sflag [#allocation6], %s241
        %s243 = sand.u32 %s94, 1
        %s244 = smul.addr %s243, 256
        %s245 = scalar_lea.vmem [#allocation5], %s244
        // Predicated region
        $region41: #{tpu_custom_call.1} parent=35 // pred_check
          %p246 = pneg %p107
        $region42: #{tpu_custom_call.1} parent=35 // pred_check_branch
          %248 = sbr.rel (%p246) target = $region44
        $region43: #{tpu_custom_call.1} parent=35 // pred_region
          %249 = dma.done %s242, 4096
        $region44: #{tpu_custom_call.1} parent=35 // pred_fallthru
          _
        %p250 = pneg %p55
        %p251 = pneg %p52
        %p252 = scmp.lt.s32.totalorder %s26, 0
        %s253 = scalar_select %p252, %s26, 0
        %s254 = smul.addr %s253, 8
        %s255 = scalar_lea.vmem %s1, %s254
        %p256 = pneg %p81
        %p257 = pneg %p78
        %s258 = sand.u32 %s94, 1
        %s259 = scalar_lea.sflag [#allocation6], %s258
        %s260 = sand.u32 %s94, 1
        %s261 = smul.addr %s260, 256
        %s262 = scalar_lea.vmem [#allocation5], %s261
        %p263 = pneg %p107
        %p264 = pneg %p104
        %p265 = scmp.lt.s32.totalorder %s27, 1
        %s266 = scalar_select %p265, %s27, 1
        %s267 = smul.addr %s266, 8
        %s268 = scalar_lea.vmem %s3, %s267
        %p269 = pneg %p133
        %p270 = pneg %p130
        %p271 = pneg %p161
        %p272 = pneg %p158
        %s273 = sand.u32 %s148, 1
        %s274 = scalar_lea.sflag [#allocation4], %s273
        %s275 = sand.u32 %s148, 1
        %s276 = smul.addr %s275, 8
        %s277 = scalar_lea.vmem [#allocation7], %s276
        %p278 = scmp.lt.s32.totalorder %s26, 0
        %s279 = scalar_select %p278, %s26, 0
        %s280 = smul.addr %s279, 8
        %s281 = scalar_lea.vmem %s1, %s280
        %s282 = smul.u32 16, %s27
        %p283 = scmp.lt.s32.totalorder %s27, 1
        %s284 = scalar_select %p283, %s27, 1
        %s285 = smul.addr %s284, 8
        %s286 = scalar_lea.vmem %s3, %s285
        %v287 = vld [vmem:[#allocation2] sm:$0xff]
        %v288 = vld [vmem:[#allocation2 + $0x8] sm:$0xff]
        %v289 = vld [vmem:[%s245] sm:$0xff]
        %v290 = vld [vmem:[%s245 + $0x8] sm:$0xff]
        %v291 = vld [vmem:[%s245 + $0x10] sm:$0xff]
        %v292 = vld [vmem:[%s245 + $0x18] sm:$0xff]
        %v293 = vld [vmem:[%s245 + $0x20] sm:$0xff]
        %v294 = vld [vmem:[%s245 + $0x28] sm:$0xff]
        %v295 = vld [vmem:[%s245 + $0x30] sm:$0xff]
        %v296 = vld [vmem:[%s245 + $0x38] sm:$0xff]
        %v297 = vld [vmem:[%s245 + $0x40] sm:$0xff]
        %v298 = vld [vmem:[%s245 + $0x48] sm:$0xff]
        %v299 = vld [vmem:[%s245 + $0x50] sm:$0xff]
        %v300 = vld [vmem:[%s245 + $0x58] sm:$0xff]
        %v301 = vld [vmem:[%s245 + $0x60] sm:$0xff]
        %v302 = vld [vmem:[%s245 + $0x68] sm:$0xff]
        %v303 = vld [vmem:[%s245 + $0x70] sm:$0xff]
        %v304 = vld [vmem:[%s245 + $0x78] sm:$0xff]
        %v305 = vld [vmem:[%s245 + $0x80] sm:$0xff]
        %v306 = vld [vmem:[%s245 + $0x88] sm:$0xff]
        %v307 = vld [vmem:[%s245 + $0x90] sm:$0xff]
        %v308 = vld [vmem:[%s245 + $0x98] sm:$0xff]
        %v309 = vld [vmem:[%s245 + $0xa0] sm:$0xff]
        %v310 = vld [vmem:[%s245 + $0xa8] sm:$0xff]
        %v311 = vld [vmem:[%s245 + $0xb0] sm:$0xff]
        %v312 = vld [vmem:[%s245 + $0xb8] sm:$0xff]
        %v313 = vld [vmem:[%s245 + $0xc0] sm:$0xff]
        %v314 = vld [vmem:[%s245 + $0xc8] sm:$0xff]
        %v315 = vld [vmem:[%s245 + $0xd0] sm:$0xff]
        %v316 = vld [vmem:[%s245 + $0xd8] sm:$0xff]
        %v317 = vld [vmem:[%s245 + $0xe0] sm:$0xff]
        %v318 = vld [vmem:[%s245 + $0xe8] sm:$0xff]
        %v319 = vld [vmem:[%s245 + $0xf0] sm:$0xff]
        %v320 = vld [vmem:[%s245 + $0xf8] sm:$0xff]
        %321 = vmatprep.subr.mxu0 %v290
        %322 = vmatpush1.xpose.msra.mxu0 %v289
        %323 = vmatprep.subr.mxu0 %v292
        %324 = vmatpush1.xpose.msra.mxu0 %v291
        %325 = vmatprep.subr.mxu0 %v294
        %326 = vmatpush1.xpose.msra.mxu0 %v293
        %327 = vmatprep.subr.mxu0 %v296
        %328 = vmatpush1.xpose.msra.mxu0 %v295
        %329 = vmatprep.subr.mxu0 %v298
        %330 = vmatpush1.xpose.msra.mxu0 %v297
        %331 = vmatprep.subr.mxu0 %v300
        %332 = vmatpush1.xpose.msra.mxu0 %v299
        %333 = vmatprep.subr.mxu0 %v302
        %334 = vmatpush1.xpose.msra.mxu0 %v301
        %335 = vmatprep.subr.mxu0 %v304
        %336 = vmatpush1.xpose.msra.mxu0 %v303
        %337 = vmatprep.subr.mxu0 %v306
        %338 = vmatpush1.xpose.msra.mxu0 %v305
        %339 = vmatprep.subr.mxu0 %v308
        %340 = vmatpush1.xpose.msra.mxu0 %v307
        %341 = vmatprep.subr.mxu0 %v310
        %342 = vmatpush1.xpose.msra.mxu0 %v309
        %343 = vmatprep.subr.mxu0 %v312
        %344 = vmatpush1.xpose.msra.mxu0 %v311
        %345 = vmatprep.subr.mxu0 %v314
        %346 = vmatpush1.xpose.msra.mxu0 %v313
        %347 = vmatprep.subr.mxu0 %v316
        %348 = vmatpush1.xpose.msra.mxu0 %v315
        %349 = vmatprep.subr.mxu0 %v318
        %350 = vmatpush1.xpose.msra.mxu0 %v317
        %351 = vmatprep.subr.mxu0 %v320
        %352 = vmatpush1.xpose.msra.mxu0 %v319
        %353 = vmatprep.subr.mxu0 0.0
        %354 = vmatpush1.xpose.msra.mxu0 0.0
        %355 = vmatprep.subr.mxu0 0.0
        %356 = vmatpush1.xpose.msra.mxu0 0.0
        %357 = vmatprep.subr.mxu0 0.0
        %358 = vmatpush1.xpose.msra.mxu0 0.0
        %359 = vmatprep.subr.mxu0 0.0
        %360 = vmatpush1.xpose.msra.mxu0 0.0
        %361 = vmatprep.subr.mxu0 0.0
        %362 = vmatpush1.xpose.msra.mxu0 0.0
        %363 = vmatprep.subr.mxu0 0.0
        %364 = vmatpush1.xpose.msra.mxu0 0.0
        %365 = vmatprep.subr.mxu0 0.0
        %366 = vmatpush1.xpose.msra.mxu0 0.0
        %367 = vmatprep.subr.mxu0 0.0
        %368 = vmatpush1.xpose.msra.mxu0 0.0
        %369 = vmatprep.subr.mxu0 0.0
        %370 = vmatpush1.xpose.msra.mxu0 0.0
        %371 = vmatprep.subr.mxu0 0.0
        %372 = vmatpush1.xpose.msra.mxu0 0.0
        %373 = vmatprep.subr.mxu0 0.0
        %374 = vmatpush1.xpose.msra.mxu0 0.0
        %375 = vmatprep.subr.mxu0 0.0
        %376 = vmatpush1.xpose.msra.mxu0 0.0
        %377 = vmatprep.subr.mxu0 0.0
        %378 = vmatpush1.xpose.msra.mxu0 0.0
        %379 = vmatprep.subr.mxu0 0.0
        %380 = vmatpush1.xpose.msra.mxu0 0.0
        %381 = vmatprep.subr.mxu0 0.0
        %382 = vmatpush1.xpose.msra.mxu0 0.0
        %383 = vmatprep.subr.mxu0 0.0
        %384 = vmatpush1.xpose.msra.mxu0 0.0
        %385 = vmatprep.mubr.f32.mxu0 %v288
        %386 = vmatmul.mubr.f32.gmra.mrb[0].mxu0 %v287
        %v387 = vpop.f32.mrb[0].mxu0
        %v388 = vadd.f32 0.0, %v387
        %v389 = vpop.f32.mrb[0].mxu0
        %390 = vdwg.mxu0
        %v391 = vld [vmem:[%s286] sm:$0x1]
        %v392 = vld [vmem:[%s286 + $0x1] sm:$0x1]
        %v393 = vld [vmem:[%s286 + $0x2] sm:$0x1]
        %v394 = vlaneseq
        %v395 = vshrl.u32 %v394, 7
        %v396 = vsub.s32 0, %v395
        %v397 = vrot.slane %v391, %v396
        %v398 = vmul.f32 %v388, %v397
        %v399 = vld [vmem:[%s281] sm:$0xff]
        %401 = vset.pattern.permute.xlu0 0
        %402 = vperm.xlu0 %401, %v399
        %v403 = vpop.permute.xlu0 %402
        %v405 = vlaneseq
        %v406 = vshrl.u32 %v405, 7
        %v407 = vsub.s32 0, %v406
        %v408 = vrot.slane %v392, %v407
        %v409 = vmul.f32 %v403, %v408
        %v410 = vadd.f32 %v398, %v409
        %v411 = vlaneseq
        %v412 = vshrl.u32 %v411, 7
        %v413 = vsub.s32 0, %v412
        %v414 = vrot.slane %v393, %v413
        %v415 = vadd.f32 %v410, %v414
        %416 = vst [vmem:[%s277] sm:$0xff] %v415
        %s417 = sand.u32 %s148, 1
        %s418 = scalar_lea.sflag [#allocation4], %s417
        %s419 = sand.u32 %s148, 1
        %s420 = smul.addr %s419, 8
        %s421 = scalar_lea.vmem [#allocation7], %s420
        // Predicated region
        $region45: #{tpu_custom_call.1} parent=35 // pred_check
          %p422 = pneg %p158
        $region46: #{tpu_custom_call.1} parent=35 // pred_check_branch
          %424 = sbr.rel (%p422) target = $region48
        $region47: #{tpu_custom_call.1} parent=35 // pred_region
          %s426 = ssub.s32 128, 128
          %427 = vsyncadd %s418, %s426
          %s428 = smul.addr %s26, 2
          %s429 = sadd.s32 %s27, %s428
          %s430 = smul.addr %s429, 128
          %s431 = scalar_lea.hbm %s4, %s430
          %s433 = sshll.u32 %s421, 4
          %s434 = int_to_ptr.vmem [resolvable:$true] %s433
          %436 = dma.vmem_to_hbm [thread:$0]  %s434, 128, %s431, %s418
        $region48: #{tpu_custom_call.1} parent=35 // pred_fallthru
          _
      $region36: #{tpu_custom_call.1} parent=5 // pred_fallthru
        _
      %p437 = scmp.le.s32.totalorder 2, %s17
      // Predicated region
      $region49: #{tpu_custom_call.1} parent=5 // pred_check
        %p438 = pneg %p437
      $region50: #{tpu_custom_call.1} parent=5 // pred_check_branch
        %440 = sbr.rel (%p438) target = $region52
      $region51: #{tpu_custom_call.1} parent=5 // pred_region
        %s441 = ssub.s32 %s17, 2
        // Predicated region
        $region53: #{tpu_custom_call.1} parent=51 // pred_check
          %p442 = pneg %p164
        $region54: #{tpu_custom_call.1} parent=51 // pred_check_branch
          %444 = sbr.rel (%p442) target = $region56
        $region55: #{tpu_custom_call.1} parent=51 // pred_region
          %s445 = sand.u32 %s149, 1
          %s446 = scalar_lea.sflag [#allocation4], %s445
          %s447 = sand.u32 %s149, 1
          %s448 = smul.addr %s447, 8
          %s449 = scalar_lea.vmem [#allocation7], %s448
          %450 = dma.done %s446, 128
        $region56: #{tpu_custom_call.1} parent=51 // pred_fallthru
          _
      $region52: #{tpu_custom_call.1} parent=5 // pred_fallthru
        _
    $region6: #{tpu_custom_call.1} parent=1 // loop_footer
      %s21 = sadd.s32 1, %s17
    $region7: #{tpu_custom_call.1} parent=1 // loop_footer_branch
      %16 = sbr.rel target = $region3
    $region8: #{tpu_custom_call.1} parent=1 // loop_exit
      _
    %451 = vsyncpa [#allocation3], 1
    %s452 = scalar_lea.sflag [#allocation3], 1
    %453 = vsyncpa %s452, 1
    %454 = vsyncpa [#allocation6], 1
    %s455 = scalar_lea.sflag [#allocation6], 1
    %456 = vsyncpa %s455, 1
    %457 = vsyncpa [#allocation4], 1
    %s458 = scalar_lea.sflag [#allocation4], 1
    %459 = vsyncpa %s458, 1

</llo_original>
